<compile_context>
chip_gen: v7x
topology: tpu7x:2x2x1
jax: 0.10.0
libtpu: 0.0.40
codegen_flags: <defaults>
</compile_context>

<pallas_src>
import functools
import math

import jax
import jax.numpy as jnp
from jax.experimental import pallas as pl
from jax.experimental.pallas import tpu as pltpu


def _round_up(x: int, m: int) -> int:
    return ((x + m - 1) // m) * m


def _sublane(dtype) -> int:
    """Dtype-aware sublane rounding: 8 rows f32, 16 bf16, 32 int8/fp8."""
    return {4: 8, 2: 16, 1: 32}.get(jnp.dtype(dtype).itemsize, 8)


@functools.lru_cache(maxsize=1)
def _hw_config():
    """Per-TPU-generation tile / VMEM tuning derived from the actual device."""
    kind = ""
    try:
        kind = (jax.devices()[0].device_kind or "").lower()
    except Exception:
        pass
    vmem_cap = 128 * 1024 * 1024
    try:
        vmem_cap = int(pltpu.get_tpu_info().vmem_capacity_bytes)
    except Exception:
        if "v7" in kind or "7x" in kind:
            vmem_cap = 64 * 1024 * 1024
    is_v7 = ("v7" in kind) or ("7x" in kind) or vmem_cap <= 64 * 1024 * 1024
    is_v5e = ("v5 lite" in kind) or ("v5e" in kind) or ("v5litepod" in kind)
    # v7x and megacore chips (v4/v5p) shard "parallel" grid axes across 2 TCs.
    num_cores = 2 if (is_v7 or "v4" in kind or "v5p" in kind) else 1
    if is_v7:
        # 64 MiB physical VMEM per TC: modest tiles, vmem_limit <= ~40 MiB.
        return dict(tk_max=512, tn_max=512, tb_max=256,
                    tile_budget=16 * 1024 * 1024,
                    vmem_limit_cap=min(40 * 1024 * 1024, int(vmem_cap * 0.6)),
                    num_cores=num_cores)
    if is_v5e:
        return dict(tk_max=1024, tn_max=1024, tb_max=128,
                    tile_budget=28 * 1024 * 1024,
                    vmem_limit_cap=64 * 1024 * 1024,
                    num_cores=num_cores)
    # v6e / v5p / v4 / default: 128 MiB physical VMEM.
    return dict(tk_max=1024, tn_max=1024, tb_max=256,
                tile_budget=32 * 1024 * 1024,
                vmem_limit_cap=64 * 1024 * 1024,
                num_cores=num_cores)


def _vlin_kernel_f32(x_ref, w_ref, b_ref, o_ref):
    """f32-output fast path: accumulate directly into the resident output.

    x_ref: (TE, TB, TK)  w_ref: (TE, TK, TN)  b_ref: (TE, 1, TN)
    o_ref: (TE, TB, TN) f32, resident across the K (last) grid axis.
    """
    k = pl.program_id(3)

    @pl.when(k == 0)
    def _init():
        # Bias is the k==0 initializer -> added exactly once, no epilogue pass.
        o_ref[...] = jnp.broadcast_to(b_ref[...].astype(o_ref.dtype),
                                      o_ref.shape)

    o_ref[...] += jnp.einsum(
        "ebk,eko->ebo", x_ref[...], w_ref[...],
        preferred_element_type=jnp.float32)


def _vlin_kernel_acc(x_ref, w_ref, b_ref, o_ref, acc_ref):
    """Generic path (non-f32 outputs): f32 scratch accumulator + cast epilogue."""
    k = pl.program_id(3)

    @pl.when(k == 0)
    def _init():
        acc_ref[...] = jnp.broadcast_to(b_ref[...].astype(jnp.float32),
                                        acc_ref.shape)

    acc_ref[...] += jnp.einsum(
        "ebk,eko->ebo", x_ref[...], w_ref[...],
        preferred_element_type=jnp.float32)

    @pl.when(k == pl.num_programs(3) - 1)
    def _finalize():
        o_ref[...] = acc_ref[...].astype(o_ref.dtype)


class VectorizedLinearPallas:
    """Ensemble linear: out[e] = x[e] @ weight[e] + bias[e].

    Parameters are padded to lane-dense (8,128)-aligned shapes once at
    construction; the per-call path only pads x when needed.
    """

    def __init__(self, weight, bias, *, config=None):
        E, In, Out = weight.shape
        assert bias.shape == (E, 1, Out), (bias.shape, (E, 1, Out))
        self.E, self.In, self.Out = E, In, Out
        self.weight, self.bias = weight, bias
        self.cfg = dict(config) if config is not None else _hw_config()

        # Tiny feature dims: padding both axes to 128 lanes inflates weight
        # traffic / MXU work by up to 16x; plain XLA wins there.
        # TODO(synk): pack ensemble members along lanes (block-diagonal) to keep
        # a Pallas path for tiny In/Out without the padding tax.
        self.use_xla = (In <= 64 and Out <= 64)
        if self.use_xla:
            return

        cfg = self.cfg
        TK = min(_round_up(In, 128), cfg["tk_max"])
        TN = min(_round_up(Out, 128), cfg["tn_max"])
        self.TK, self.TN = TK, TN
        self.In_pad = _round_up(In, TK)
        self.Out_pad = _round_up(Out, TN)

        # Pad parameters ONCE (hoisted out of the per-call hot path).
        w_p = weight
        if (self.In_pad, self.Out_pad) != (In, Out):
            w_p = jnp.pad(weight, ((0, 0), (0, self.In_pad - In),
                                   (0, self.Out_pad - Out)))
        b_p = bias
        if self.Out_pad != Out:
            b_p = jnp.pad(bias, ((0, 0), (0, 0), (0, self.Out_pad - Out)))
        self.w_p, self.b_p = w_p, b_p

    def __call__(self, x):
        E, B, In = x.shape
        assert E == self.E and In == self.In, (x.shape, (self.E, self.In))
        if self.use_xla:
            return jnp.einsum("ebi,eio->ebo", x, self.weight) + self.bias

        cfg = self.cfg
        TK, TN = self.TK, self.TN
        In_pad, Out_pad, Out = self.In_pad, self.Out_pad, self.Out
        out_dtype = x.dtype
        f32_out = jnp.dtype(out_dtype) == jnp.dtype(jnp.float32)

        isz = jnp.dtype(x.dtype).itemsize
        wsz = jnp.dtype(self.w_p.dtype).itemsize
        bsz = jnp.dtype(self.b_p.dtype).itemsize
        osz = jnp.dtype(out_dtype).itemsize
        budget = cfg["tile_budget"]

        def step_bytes(te, tb, wbuf=2):
            x_b = 2 * te * tb * TK * isz           # double-buffered x
            w_b = wbuf * te * TK * TN * wsz        # weight pipeline buffers
            b_b = 2 * te * TN * bsz
            o_b = 2 * te * tb * TN * osz
            acc_b = 0 if f32_out else te * tb * TN * 4
            return x_b + w_b + b_b + o_b + acc_b

        # Batch tiling: dtype-aware sublane rounding plus its own grid axis.
        sub = _sublane(x.dtype)
        tb_max = max(cfg["tb_max"], sub)
        b_pad_min = _round_up(max(B, 1), sub)
        TB = b_pad_min if b_pad_min <= tb_max else tb_max
        B_pad = _round_up(b_pad_min, TB)
        while TB > sub and step_bytes(1, TB) > budget:
            TB = max(sub, _round_up(TB // 2, sub))
            B_pad = _round_up(max(B, 1), TB)

        b_tiles = B_pad // TB
        n_tiles = Out_pad // TN
        k_tiles = In_pad // TK

        # TE: fold ensemble members per step, but keep the parallel grid extent
        # >= number of TensorCores so v7x / megacore chips are not half idle.
        ncores = cfg["num_cores"]
        parallel_bn = b_tiles * n_tiles
        need_e_tiles = 1
        if ncores > 1 and parallel_bn < ncores:
            need_e_tiles = min(self.E, -(-ncores // parallel_bn))
        TE = 1
        for cand in range(self.E, 0, -1):
            if self.E % cand:
                continue
            if step_bytes(cand, TB) > budget:
                continue
            if cand > 1 and self.E // cand < need_e_tiles:
                continue
            TE = cand
            break
        e_tiles = self.E // TE

        # Deepen the weight pipeline when per-step compute is tiny (exposed
        # weight DMA) and a third buffer still fits the budget.
        w_buffers = 2
        if (TB <= 64 and e_tiles * b_tiles * n_tiles * k_tiles >= 3
                and step_bytes(TE, TB, wbuf=3) <= budget):
            w_buffers = 3

        # Pad x only if needed (parameters were padded once at init).
        x_p = x
        if (B_pad, In_pad) != (B, In):
            x_p = jnp.pad(x, ((0, 0), (0, B_pad - B), (0, In_pad - In)))

        grid = (e_tiles, b_tiles, n_tiles, k_tiles)
        flops = 2 * self.E * B * In * Out
        bytes_accessed = (x.size * isz + self.w_p.size * wsz
                          + self.b_p.size * bsz + self.E * B * Out * osz)
        vmem_limit = int(min(max(step_bytes(TE, TB, wbuf=w_buffers) + (2 << 20),
                                 32 * 1024 * 1024),
                             cfg["vmem_limit_cap"]))

        kernel = _vlin_kernel_f32 if f32_out else _vlin_kernel_acc
        scratch = [] if f32_out else [pltpu.VMEM((TE, TB, TN), jnp.float32)]

        def call(wbuf):
            if wbuf == 2:
                w_spec = pl.BlockSpec((TE, TK, TN), lambda g, b, n, k: (g, k, n))
            else:
                w_spec = pl.BlockSpec((TE, TK, TN), lambda g, b, n, k: (g, k, n),
                                      pipeline_mode=pl.Buffered(wbuf))
            return pl.pallas_call(
                kernel,
                out_shape=jax.ShapeDtypeStruct((self.E, B_pad, Out_pad),
                                               out_dtype),
                grid_spec=pltpu.PrefetchScalarGridSpec(
                    num_scalar_prefetch=0,
                    grid=grid,
                    in_specs=[
                        pl.BlockSpec((TE, TB, TK), lambda g, b, n, k: (g, b, k)),
                        w_spec,
                        pl.BlockSpec((TE, 1, TN), lambda g, b, n, k: (g, 0, n)),
                    ],
                    out_specs=pl.BlockSpec((TE, TB, TN),
                                           lambda g, b, n, k: (g, b, n)),
                    scratch_shapes=scratch,
                ),
                compiler_params=pltpu.CompilerParams(
                    dimension_semantics=("parallel", "parallel", "parallel",
                                         "arbitrary"),
                    vmem_limit_bytes=vmem_limit,
                ),
                cost_estimate=pl.CostEstimate(
                    flops=flops, transcendentals=0,
                    bytes_accessed=bytes_accessed),
            )(x_p, self.w_p, self.b_p)

        try:
            out_p = call(w_buffers)
        except Exception:
            if w_buffers == 2:
                raise
            out_p = call(2)  # conservative fallback to default pipeline depth

        if (B_pad, Out_pad) != (B, Out):
            out_p = out_p[:, :B, :Out]
        return out_p


def vectorized_linear(x, weight, bias):
    """One-shot functional form.  For repeated calls build
    VectorizedLinearPallas once so parameter padding happens only once."""
    return VectorizedLinearPallas(weight, bias)(x)


def init_params(key, in_features, out_features, ensemble_size,
                dtype=jnp.float32):
    """U(-stdv, stdv), stdv = 1/sqrt(in_features) — matches reset_parameters()."""
    stdv = 1.0 / math.sqrt(in_features)
    kw, kb = jax.random.split(key)
    weight = jax.random.uniform(
        kw, (ensemble_size, in_features, out_features), dtype=jnp.float32,
        minval=-stdv, maxval=stdv).astype(dtype)
    bias = jax.random.uniform(
        kb, (ensemble_size, 1, out_features), dtype=jnp.float32,
        minval=-stdv, maxval=stdv).astype(dtype)
    return weight, bias


if __name__ == "__main__":
    key = jax.random.PRNGKey(0)
    kx1, kp1, kx2, kp2, kx3, kp3, kx4, kp4 = jax.random.split(key, 8)
    hi = jax.lax.Precision.HIGHEST

    # 1) Small f32 case: f32 fast path (direct output accumulation), pad-once.
    E, B, In, Out = 4, 8, 256, 128
    x = jax.random.normal(kx1, (E, B, In), dtype=jnp.float32)
    w, b = init_params(kp1, In, Out, E)
    layer = VectorizedLinearPallas(w, b)
    out = jax.block_until_ready(layer(x))
    ref = jnp.einsum("ebi,eio->ebo", x, w, precision=hi) + b
    assert out.shape == (E, B, Out)
    assert jnp.allclose(out, ref, atol=1e-2, rtol=1e-2), "f32 small mismatch"

    # 2) Ragged / tiled case: per-call x padding, K tiling, output slicing.
    E2, B2, In2, Out2 = 3, 20, 2000, 200
    x2 = jax.random.normal(kx2, (E2, B2, In2), dtype=jnp.float32)
    w2, b2 = init_params(kp2, In2, Out2, E2)
    layer2 = VectorizedLinearPallas(w2, b2)
    out2 = jax.block_until_ready(layer2(x2))
    ref2 = jnp.einsum("ebi,eio->ebo", x2, w2, precision=hi) + b2
    assert out2.shape == (E2, B2, Out2)
    assert jnp.allclose(out2, ref2, atol=1e-2, rtol=1e-2), "tiled mismatch"

    # 3) bf16 case: exercises the f32 scratch-accumulator + cast epilogue path.
    E3, B3, In3, Out3 = 2, 16, 256, 256
    x3 = jax.random.normal(kx3, (E3, B3, In3),
                           dtype=jnp.float32).astype(jnp.bfloat16)
    w3, b3 = init_params(kp3, In3, Out3, E3, dtype=jnp.bfloat16)
    layer3 = VectorizedLinearPallas(w3, b3)
    out3 = jax.block_until_ready(layer3(x3))
    ref3 = (jnp.einsum("ebi,eio->ebo", x3.astype(jnp.float32),
                       w3.astype(jnp.float32), precision=hi)
            + b3.astype(jnp.float32))
    assert out3.shape == (E3, B3, Out3)
    assert jnp.allclose(out3.astype(jnp.float32), ref3,
                        atol=3e-2, rtol=3e-2), "bf16 mismatch"

    # 4) Tiny feature dims: XLA fallback (avoids the 128-lane padding tax).
    E4, B4, In4, Out4 = 4, 8, 32, 32
    x4 = jax.random.normal(kx4, (E4, B4, In4), dtype=jnp.float32)
    w4, b4 = init_params(kp4, In4, Out4, E4)
    out4 = jax.block_until_ready(vectorized_linear(x4, w4, b4))
    ref4 = jnp.einsum("ebi,eio->ebo", x4, w4) + b4
    assert out4.shape == (E4, B4, Out4)
    assert jnp.allclose(out4, ref4, atol=1e-4, rtol=1e-4), "tiny-dim mismatch"

    print("KERNEL_OK")
</pallas_src>

<mosaic_0001>
module attributes {stable_mosaic.version = 11 : i64} {
  func.func @_vlin_kernel_f32(%arg0: i32, %arg1: i32, %arg2: i32, %arg3: i32, %arg4: memref<4x8x256xf32, #tpu.memory_space<vmem>>, %arg5: memref<4x256x128xf32, #tpu.memory_space<vmem>>, %arg6: memref<4x1x128xf32, #tpu.memory_space<vmem>>, %arg7: memref<4x8x128xf32, #tpu.memory_space<vmem>>) attributes {dimension_semantics = [#tpu.dimension_semantics<parallel>, #tpu.dimension_semantics<parallel>, #tpu.dimension_semantics<parallel>, #tpu.dimension_semantics<arbitrary>], iteration_bounds = array<i64: 1, 1, 1, 1>, scalar_prefetch = 0 : i64, scratch_operands = 0 : i64, tpu.core_type = #tpu.core_type<tc>, window_params = [{transform_indices = @transform_0, window_bounds = array<i64: 4, 8, 256>}, {transform_indices = @transform_1, window_bounds = array<i64: 4, 256, 128>}, {transform_indices = @transform_2, window_bounds = array<i64: 4, 1, 128>}, {transform_indices = @transform_3, window_bounds = array<i64: 4, 8, 128>}]} {
    %c0_i32 = arith.constant 0 : i32
    %0 = arith.cmpi eq, %arg3, %c0_i32 : i32
    %1 = arith.extui %0 : i1 to i32
    %c0_i32_0 = arith.constant 0 : i32
    %2 = arith.cmpi ne, %1, %c0_i32_0 : i32
    scf.if %2 {
      %c0_12 = arith.constant 0 : index
      %c0_13 = arith.constant 0 : index
      %c0_14 = arith.constant 0 : index
      %9 = vector.load %arg6[%c0_12, %c0_13, %c0_14] : memref<4x1x128xf32, #tpu.memory_space<vmem>>, vector<4x1x128xf32>
      %10 = vector.shape_cast %9 : vector<4x1x128xf32> to vector<4x1x128xf32>
      %11 = vector.broadcast %10 : vector<4x1x128xf32> to vector<4x8x128xf32>
      %c0_15 = arith.constant 0 : index
      %c0_16 = arith.constant 0 : index
      %c0_17 = arith.constant 0 : index
      %12 = vector.load %arg7[%c0_15, %c0_16, %c0_17] : memref<4x8x128xf32, #tpu.memory_space<vmem>>, vector<4x8x128xf32>
      tpu.vector_store %arg7[%c0_15, %c0_16, %c0_17], %11 {strides = array<i32>} : memref<4x8x128xf32, #tpu.memory_space<vmem>>, vector<4x8x128xf32>,
    } else {
    }
    %c0 = arith.constant 0 : index
    %c0_1 = arith.constant 0 : index
    %c0_2 = arith.constant 0 : index
    %3 = vector.load %arg7[%c0, %c0_1, %c0_2] : memref<4x8x128xf32, #tpu.memory_space<vmem>>, vector<4x8x128xf32>
    %c0_3 = arith.constant 0 : index
    %c0_4 = arith.constant 0 : index
    %c0_5 = arith.constant 0 : index
    %4 = vector.load %arg4[%c0_3, %c0_4, %c0_5] : memref<4x8x256xf32, #tpu.memory_space<vmem>>, vector<4x8x256xf32>
    %c0_6 = arith.constant 0 : index
    %c0_7 = arith.constant 0 : index
    %c0_8 = arith.constant 0 : index
    %5 = vector.load %arg5[%c0_6, %c0_7, %c0_8] : memref<4x256x128xf32, #tpu.memory_space<vmem>>, vector<4x256x128xf32>
    "tpu.trace_start"() <{level = 10 : i32, message = "ebk,eko->ebo"}> : () -> ()
    %cst = arith.constant dense<0.000000e+00> : vector<4x8x128xf32>
    %6 = tpu.matmul %4, %5, %cst {dimension_numbers = #tpu.dot_dimension_numbers<[2], [1], [1], [2], [0, 0, 0, 1, 1, 2], [0], [0]>} : vector<4x8x256xf32>, vector<4x256x128xf32>, vector<4x8x128xf32> -> vector<4x8x128xf32>
    "tpu.trace_stop"() : () -> ()
    %7 = arith.addf %3, %6 : vector<4x8x128xf32>
    %c0_9 = arith.constant 0 : index
    %c0_10 = arith.constant 0 : index
    %c0_11 = arith.constant 0 : index
    %8 = vector.load %arg7[%c0_9, %c0_10, %c0_11] : memref<4x8x128xf32, #tpu.memory_space<vmem>>, vector<4x8x128xf32>
    tpu.vector_store %arg7[%c0_9, %c0_10, %c0_11], %7 {strides = array<i32>} : memref<4x8x128xf32, #tpu.memory_space<vmem>>, vector<4x8x128xf32>,
    return
  }
  func.func @transform_0(%arg0: i32, %arg1: i32, %arg2: i32, %arg3: i32) -> (i32, i32, i32) {
    %c0_i32 = arith.constant 0 : i32
    return %arg0, %arg1, %arg3 : i32, i32, i32
  }
  func.func @transform_1(%arg0: i32, %arg1: i32, %arg2: i32, %arg3: i32) -> (i32, i32, i32) {
    %c0_i32 = arith.constant 0 : i32
    return %arg0, %arg3, %arg2 : i32, i32, i32
  }
  func.func @transform_2(%arg0: i32, %arg1: i32, %arg2: i32, %arg3: i32) -> (i32, i32, i32) {
    %c0_i32 = arith.constant 0 : i32
    %c0_i32_0 = arith.constant 0 : i32
    return %arg0, %c0_i32, %arg2 : i32, i32, i32
  }
  func.func @transform_3(%arg0: i32, %arg1: i32, %arg2: i32, %arg3: i32) -> (i32, i32, i32) {
    %c0_i32 = arith.constant 0 : i32
    return %arg0, %arg1, %arg2 : i32, i32, i32
  }
}

</mosaic_0001>

<llo_original>
// kernel: tpu_custom_call.1
$region0: #{tpu_custom_call.1}
  #allocation0 [shape = 'u32[]', space=smem, size = 0x4, offset = 0x4, fixed_abs, tag = 'smem constant byte address 0x4 - core index']
  #allocation1 [shape = 'u32[144,128]{1,0:T(1,128)}', space=vmem, size = 0x12000, scoped, tag = 'internal scratch']
  %s0 = inlined_call_operand.hbm [shape: f32[4,8,256], index: 0, kind: input, shape index: {}]
  %s1 = inlined_call_operand.hbm [shape: f32[4,256,128], index: 1, kind: input, shape index: {}]
  %s2 = inlined_call_operand.vmem [shape: f32[4,1,128], index: 2, kind: input, shape index: {}]
  %s3 = inlined_call_operand.hbm [shape: f32[4,8,128], index: 3, kind: output, shape index: {}]
  %s4 = sld [smem:[#allocation0]]
  $region34: #{tpu_custom_call.1} parent=0
    _
  %s6 = ssub.s32 1, %s4
  %s7 = scalar_select 0, %s6, %s4
  $region1: #{tpu_custom_call.1} parent=0
    #allocation2 [shape = 'u8[32768]{0}', space=vmem, size = 0x8000, scoped, tag = 'input window, operand 0, single buffered']
    #allocation3 [shape = 's32[1]{0}', space=sflag, size = 0x4, scoped, tag = 'scoped memory for tpu_custom_call.1']
    #allocation4 [shape = 's32[1]{0}', space=sflag, size = 0x4, scoped, tag = 'scoped memory for tpu_custom_call.1']
    #allocation5 [shape = 'u8[524288]{0}', space=vmem, size = 0x80000, scoped, tag = 'input window, operand 1, single buffered']
    #allocation6 [shape = 's32[1]{0}', space=sflag, size = 0x4, scoped, tag = 'scoped memory for tpu_custom_call.1']
    #allocation7 [shape = 'u8[16384]{0}', space=vmem, size = 0x4000, scoped, tag = 'output window, operand 0, single buffered']
    %8 = vsyncpa [#allocation3], 0
    %9 = vsyncpa [#allocation6], 0
    %10 = vsyncpa [#allocation4], 0
    // Predicated region
    $region2: #{tpu_custom_call.1} parent=1 // pred_check
      _
    $region3: #{tpu_custom_call.1} parent=1 // pred_check_branch
      %12 = sbr.rel (0) target = $region5
    $region4: #{tpu_custom_call.1} parent=1 // pred_region
      %s14 = ssub.s32 1024, 1024
      %15 = vsyncadd [#allocation3], %s14
      %s16 = sshll.u32 [#allocation2], 4
      %s17 = int_to_ptr.vmem [resolvable:$true] %s16
      %22 = dma.hbm_to_vmem [thread:$0]  %s0, 1024, %s17, [#allocation3], 256, 256, 16
    $region5: #{tpu_custom_call.1} parent=1 // pred_fallthru
      _
    // Predicated region
    $region6: #{tpu_custom_call.1} parent=1 // pred_check
      _
    $region7: #{tpu_custom_call.1} parent=1 // pred_check_branch
      %24 = sbr.rel (0) target = $region9
    $region8: #{tpu_custom_call.1} parent=1 // pred_region
      %s26 = ssub.s32 16384, 16384
      %27 = vsyncadd [#allocation6], %s26
      %s28 = sshll.u32 [#allocation5], 4
      %s29 = int_to_ptr.vmem [resolvable:$true] %s28
      %34 = dma.hbm_to_vmem [thread:$0]  %s1, 16384, %s29, [#allocation6], 128, 128, 8
    $region9: #{tpu_custom_call.1} parent=1 // pred_fallthru
      _
    // Predicated region
    $region10: #{tpu_custom_call.1} parent=1 // pred_check
      _
    $region11: #{tpu_custom_call.1} parent=1 // pred_check_branch
      %36 = sbr.rel (0) target = $region13
    $region12: #{tpu_custom_call.1} parent=1 // pred_region
      _
    $region13: #{tpu_custom_call.1} parent=1 // pred_fallthru
      _
    // Predicated region
    $region14: #{tpu_custom_call.1} parent=1 // pred_check
      _
    $region15: #{tpu_custom_call.1} parent=1 // pred_check_branch
      %38 = sbr.rel (0) target = $region17
    $region16: #{tpu_custom_call.1} parent=1 // pred_region
      %39 = dma.done [#allocation3], 1024
    $region17: #{tpu_custom_call.1} parent=1 // pred_fallthru
      _
    // Predicated region
    $region18: #{tpu_custom_call.1} parent=1 // pred_check
      _
    $region19: #{tpu_custom_call.1} parent=1 // pred_check_branch
      %41 = sbr.rel (0) target = $region21
    $region20: #{tpu_custom_call.1} parent=1 // pred_region
      %42 = dma.done [#allocation6], 16384
    $region21: #{tpu_custom_call.1} parent=1 // pred_fallthru
      _
    %p43 = scmp.eq.s32.totalorder 0, 0
    // Predicated region
    $region22: #{tpu_custom_call.1} parent=1 // pred_check
      %p44 = pneg %p43
    $region23: #{tpu_custom_call.1} parent=1 // pred_check_branch
      %46 = sbr.rel (%p44) target = $region25
    $region24: #{tpu_custom_call.1} parent=1 // pred_region
      %v47 = vld [vmem:[%s2] sm:$0x1]
      %v48 = vld [vmem:[%s2 + $0x1] sm:$0x1]
      %v49 = vld [vmem:[%s2 + $0x2] sm:$0x1]
      %v50 = vld [vmem:[%s2 + $0x3] sm:$0x1]
      %v55 = vlaneseq
      %v56 = vshrl.u32 %v55, 7
      %v57 = vsub.s32 0, %v56
      %v58 = vrot.slane %v47, %v57
      %v59 = vlaneseq
      %v60 = vshrl.u32 %v59, 7
      %v61 = vsub.s32 0, %v60
      %v62 = vrot.slane %v48, %v61
      %v63 = vlaneseq
      %v64 = vshrl.u32 %v63, 7
      %v65 = vsub.s32 0, %v64
      %v66 = vrot.slane %v49, %v65
      %v67 = vlaneseq
      %v68 = vshrl.u32 %v67, 7
      %v69 = vsub.s32 0, %v68
      %v70 = vrot.slane %v50, %v69
      %75 = vst [vmem:[#allocation7] sm:$0xff] %v58
      %76 = vst [vmem:[#allocation7 + $0x8] sm:$0xff] %v62
      %77 = vst [vmem:[#allocation7 + $0x10] sm:$0xff] %v66
      %78 = vst [vmem:[#allocation7 + $0x18] sm:$0xff] %v70
    $region25: #{tpu_custom_call.1} parent=1 // pred_fallthru
      _
    %v79 = vld [vmem:[#allocation7] sm:$0xff]
    %v80 = vld [vmem:[#allocation7 + $0x8] sm:$0xff]
    %v81 = vld [vmem:[#allocation7 + $0x10] sm:$0xff]
    %v82 = vld [vmem:[#allocation7 + $0x18] sm:$0xff]
    %v83 = vld [vmem:[#allocation2] sm:$0xff]
    %v84 = vld [vmem:[#allocation2 + $0x8] sm:$0xff]
    %v85 = vld [vmem:[#allocation2 + $0x10] sm:$0xff]
    %v86 = vld [vmem:[#allocation2 + $0x18] sm:$0xff]
    %v87 = vld [vmem:[#allocation2 + $0x20] sm:$0xff]
    %v88 = vld [vmem:[#allocation2 + $0x28] sm:$0xff]
    %v89 = vld [vmem:[#allocation2 + $0x30] sm:$0xff]
    %v90 = vld [vmem:[#allocation2 + $0x38] sm:$0xff]
    %v91 = vld [vmem:[#allocation5] sm:$0xff]
    %v92 = vld [vmem:[#allocation5 + $0x8] sm:$0xff]
    %v93 = vld [vmem:[#allocation5 + $0x10] sm:$0xff]
    %v94 = vld [vmem:[#allocation5 + $0x18] sm:$0xff]
    %v95 = vld [vmem:[#allocation5 + $0x20] sm:$0xff]
    %v96 = vld [vmem:[#allocation5 + $0x28] sm:$0xff]
    %v97 = vld [vmem:[#allocation5 + $0x30] sm:$0xff]
    %v98 = vld [vmem:[#allocation5 + $0x38] sm:$0xff]
    %v99 = vld [vmem:[#allocation5 + $0x40] sm:$0xff]
    %v100 = vld [vmem:[#allocation5 + $0x48] sm:$0xff]
    %v101 = vld [vmem:[#allocation5 + $0x50] sm:$0xff]
    %v102 = vld [vmem:[#allocation5 + $0x58] sm:$0xff]
    %v103 = vld [vmem:[#allocation5 + $0x60] sm:$0xff]
    %v104 = vld [vmem:[#allocation5 + $0x68] sm:$0xff]
    %v105 = vld [vmem:[#allocation5 + $0x70] sm:$0xff]
    %v106 = vld [vmem:[#allocation5 + $0x78] sm:$0xff]
    %v107 = vld [vmem:[#allocation5 + $0x80] sm:$0xff]
    %v108 = vld [vmem:[#allocation5 + $0x88] sm:$0xff]
    %v109 = vld [vmem:[#allocation5 + $0x90] sm:$0xff]
    %v110 = vld [vmem:[#allocation5 + $0x98] sm:$0xff]
    %v111 = vld [vmem:[#allocation5 + $0xa0] sm:$0xff]
    %v112 = vld [vmem:[#allocation5 + $0xa8] sm:$0xff]
    %v113 = vld [vmem:[#allocation5 + $0xb0] sm:$0xff]
    %v114 = vld [vmem:[#allocation5 + $0xb8] sm:$0xff]
    %v115 = vld [vmem:[#allocation5 + $0xc0] sm:$0xff]
    %v116 = vld [vmem:[#allocation5 + $0xc8] sm:$0xff]
    %v117 = vld [vmem:[#allocation5 + $0xd0] sm:$0xff]
    %v118 = vld [vmem:[#allocation5 + $0xd8] sm:$0xff]
    %v119 = vld [vmem:[#allocation5 + $0xe0] sm:$0xff]
    %v120 = vld [vmem:[#allocation5 + $0xe8] sm:$0xff]
    %v121 = vld [vmem:[#allocation5 + $0xf0] sm:$0xff]
    %v122 = vld [vmem:[#allocation5 + $0xf8] sm:$0xff]
    %v123 = vld [vmem:[#allocation5 + $0x100] sm:$0xff]
    %v124 = vld [vmem:[#allocation5 + $0x108] sm:$0xff]
    %v125 = vld [vmem:[#allocation5 + $0x110] sm:$0xff]
    %v126 = vld [vmem:[#allocation5 + $0x118] sm:$0xff]
    %v127 = vld [vmem:[#allocation5 + $0x120] sm:$0xff]
    %v128 = vld [vmem:[#allocation5 + $0x128] sm:$0xff]
    %v129 = vld [vmem:[#allocation5 + $0x130] sm:$0xff]
    %v130 = vld [vmem:[#allocation5 + $0x138] sm:$0xff]
    %v131 = vld [vmem:[#allocation5 + $0x140] sm:$0xff]
    %v132 = vld [vmem:[#allocation5 + $0x148] sm:$0xff]
    %v133 = vld [vmem:[#allocation5 + $0x150] sm:$0xff]
    %v134 = vld [vmem:[#allocation5 + $0x158] sm:$0xff]
    %v135 = vld [vmem:[#allocation5 + $0x160] sm:$0xff]
    %v136 = vld [vmem:[#allocation5 + $0x168] sm:$0xff]
    %v137 = vld [vmem:[#allocation5 + $0x170] sm:$0xff]
    %v138 = vld [vmem:[#allocation5 + $0x178] sm:$0xff]
    %v139 = vld [vmem:[#allocation5 + $0x180] sm:$0xff]
    %v140 = vld [vmem:[#allocation5 + $0x188] sm:$0xff]
    %v141 = vld [vmem:[#allocation5 + $0x190] sm:$0xff]
    %v142 = vld [vmem:[#allocation5 + $0x198] sm:$0xff]
    %v143 = vld [vmem:[#allocation5 + $0x1a0] sm:$0xff]
    %v144 = vld [vmem:[#allocation5 + $0x1a8] sm:$0xff]
    %v145 = vld [vmem:[#allocation5 + $0x1b0] sm:$0xff]
    %v146 = vld [vmem:[#allocation5 + $0x1b8] sm:$0xff]
    %v147 = vld [vmem:[#allocation5 + $0x1c0] sm:$0xff]
    %v148 = vld [vmem:[#allocation5 + $0x1c8] sm:$0xff]
    %v149 = vld [vmem:[#allocation5 + $0x1d0] sm:$0xff]
    %v150 = vld [vmem:[#allocation5 + $0x1d8] sm:$0xff]
    %v151 = vld [vmem:[#allocation5 + $0x1e0] sm:$0xff]
    %v152 = vld [vmem:[#allocation5 + $0x1e8] sm:$0xff]
    %v153 = vld [vmem:[#allocation5 + $0x1f0] sm:$0xff]
    %v154 = vld [vmem:[#allocation5 + $0x1f8] sm:$0xff]
    %v155 = vld [vmem:[#allocation5 + $0x200] sm:$0xff]
    %v156 = vld [vmem:[#allocation5 + $0x208] sm:$0xff]
    %v157 = vld [vmem:[#allocation5 + $0x210] sm:$0xff]
    %v158 = vld [vmem:[#allocation5 + $0x218] sm:$0xff]
    %v159 = vld [vmem:[#allocation5 + $0x220] sm:$0xff]
    %v160 = vld [vmem:[#allocation5 + $0x228] sm:$0xff]
    %v161 = vld [vmem:[#allocation5 + $0x230] sm:$0xff]
    %v162 = vld [vmem:[#allocation5 + $0x238] sm:$0xff]
    %v163 = vld [vmem:[#allocation5 + $0x240] sm:$0xff]
    %v164 = vld [vmem:[#allocation5 + $0x248] sm:$0xff]
    %v165 = vld [vmem:[#allocation5 + $0x250] sm:$0xff]
    %v166 = vld [vmem:[#allocation5 + $0x258] sm:$0xff]
    %v167 = vld [vmem:[#allocation5 + $0x260] sm:$0xff]
    %v168 = vld [vmem:[#allocation5 + $0x268] sm:$0xff]
    %v169 = vld [vmem:[#allocation5 + $0x270] sm:$0xff]
    %v170 = vld [vmem:[#allocation5 + $0x278] sm:$0xff]
    %v171 = vld [vmem:[#allocation5 + $0x280] sm:$0xff]
    %v172 = vld [vmem:[#allocation5 + $0x288] sm:$0xff]
    %v173 = vld [vmem:[#allocation5 + $0x290] sm:$0xff]
    %v174 = vld [vmem:[#allocation5 + $0x298] sm:$0xff]
    %v175 = vld [vmem:[#allocation5 + $0x2a0] sm:$0xff]
    %v176 = vld [vmem:[#allocation5 + $0x2a8] sm:$0xff]
    %v177 = vld [vmem:[#allocation5 + $0x2b0] sm:$0xff]
    %v178 = vld [vmem:[#allocation5 + $0x2b8] sm:$0xff]
    %v179 = vld [vmem:[#allocation5 + $0x2c0] sm:$0xff]
    %v180 = vld [vmem:[#allocation5 + $0x2c8] sm:$0xff]
    %v181 = vld [vmem:[#allocation5 + $0x2d0] sm:$0xff]
    %v182 = vld [vmem:[#allocation5 + $0x2d8] sm:$0xff]
    %v183 = vld [vmem:[#allocation5 + $0x2e0] sm:$0xff]
    %v184 = vld [vmem:[#allocation5 + $0x2e8] sm:$0xff]
    %v185 = vld [vmem:[#allocation5 + $0x2f0] sm:$0xff]
    %v186 = vld [vmem:[#allocation5 + $0x2f8] sm:$0xff]
    %v187 = vld [vmem:[#allocation5 + $0x300] sm:$0xff]
    %v188 = vld [vmem:[#allocation5 + $0x308] sm:$0xff]
    %v189 = vld [vmem:[#allocation5 + $0x310] sm:$0xff]
    %v190 = vld [vmem:[#allocation5 + $0x318] sm:$0xff]
    %v191 = vld [vmem:[#allocation5 + $0x320] sm:$0xff]
    %v192 = vld [vmem:[#allocation5 + $0x328] sm:$0xff]
    %v193 = vld [vmem:[#allocation5 + $0x330] sm:$0xff]
    %v194 = vld [vmem:[#allocation5 + $0x338] sm:$0xff]
    %v195 = vld [vmem:[#allocation5 + $0x340] sm:$0xff]
    %v196 = vld [vmem:[#allocation5 + $0x348] sm:$0xff]
    %v197 = vld [vmem:[#allocation5 + $0x350] sm:$0xff]
    %v198 = vld [vmem:[#allocation5 + $0x358] sm:$0xff]
    %v199 = vld [vmem:[#allocation5 + $0x360] sm:$0xff]
    %v200 = vld [vmem:[#allocation5 + $0x368] sm:$0xff]
    %v201 = vld [vmem:[#allocation5 + $0x370] sm:$0xff]
    %v202 = vld [vmem:[#allocation5 + $0x378] sm:$0xff]
    %v203 = vld [vmem:[#allocation5 + $0x380] sm:$0xff]
    %v204 = vld [vmem:[#allocation5 + $0x388] sm:$0xff]
    %v205 = vld [vmem:[#allocation5 + $0x390] sm:$0xff]
    %v206 = vld [vmem:[#allocation5 + $0x398] sm:$0xff]
    %v207 = vld [vmem:[#allocation5 + $0x3a0] sm:$0xff]
    %v208 = vld [vmem:[#allocation5 + $0x3a8] sm:$0xff]
    %v209 = vld [vmem:[#allocation5 + $0x3b0] sm:$0xff]
    %v210 = vld [vmem:[#allocation5 + $0x3b8] sm:$0xff]
    %v211 = vld [vmem:[#allocation5 + $0x3c0] sm:$0xff]
    %v212 = vld [vmem:[#allocation5 + $0x3c8] sm:$0xff]
    %v213 = vld [vmem:[#allocation5 + $0x3d0] sm:$0xff]
    %v214 = vld [vmem:[#allocation5 + $0x3d8] sm:$0xff]
    %v215 = vld [vmem:[#allocation5 + $0x3e0] sm:$0xff]
    %v216 = vld [vmem:[#allocation5 + $0x3e8] sm:$0xff]
    %v217 = vld [vmem:[#allocation5 + $0x3f0] sm:$0xff]
    %v218 = vld [vmem:[#allocation5 + $0x3f8] sm:$0xff]
    %219 = vmatprep.subr.mxu0 0.0
    %220 = vmatpush1.msra.mxu0 %v91
    %221 = vmatprep.subr.mxu0 0.0
    %222 = vmatpush1.msra.mxu0 %v92
    %223 = vmatprep.subr.mxu0 0.0
    %224 = vmatpush1.msra.mxu0 %v93
    %225 = vmatprep.subr.mxu0 0.0
    %226 = vmatpush1.msra.mxu0 %v94
    %227 = vmatprep.subr.mxu0 0.0
    %228 = vmatpush1.msra.mxu0 %v95
    %229 = vmatprep.subr.mxu0 0.0
    %230 = vmatpush1.msra.mxu0 %v96
    %231 = vmatprep.subr.mxu0 0.0
    %232 = vmatpush1.msra.mxu0 %v97
    %233 = vmatprep.subr.mxu0 0.0
    %234 = vmatpush1.msra.mxu0 %v98
    %235 = vmatprep.subr.mxu0 0.0
    %236 = vmatpush1.msra.mxu0 %v99
    %237 = vmatprep.subr.mxu0 0.0
    %238 = vmatpush1.msra.mxu0 %v100
    %239 = vmatprep.subr.mxu0 0.0
    %240 = vmatpush1.msra.mxu0 %v101
    %241 = vmatprep.subr.mxu0 0.0
    %242 = vmatpush1.msra.mxu0 %v102
    %243 = vmatprep.subr.mxu0 0.0
    %244 = vmatpush1.msra.mxu0 %v103
    %245 = vmatprep.subr.mxu0 0.0
    %246 = vmatpush1.msra.mxu0 %v104
    %247 = vmatprep.subr.mxu0 0.0
    %248 = vmatpush1.msra.mxu0 %v105
    %249 = vmatprep.subr.mxu0 0.0
    %250 = vmatpush1.msra.mxu0 %v106
    %251 = vmatprep.subr.mxu0 0.0
    %252 = vmatpush1.msra.mxu0 %v107
    %253 = vmatprep.subr.mxu0 0.0
    %254 = vmatpush1.msra.mxu0 %v108
    %255 = vmatprep.subr.mxu0 0.0
    %256 = vmatpush1.msra.mxu0 %v109
    %257 = vmatprep.subr.mxu0 0.0
    %258 = vmatpush1.msra.mxu0 %v110
    %259 = vmatprep.subr.mxu0 0.0
    %260 = vmatpush1.msra.mxu0 %v111
    %261 = vmatprep.subr.mxu0 0.0
    %262 = vmatpush1.msra.mxu0 %v112
    %263 = vmatprep.subr.mxu0 0.0
    %264 = vmatpush1.msra.mxu0 %v113
    %265 = vmatprep.subr.mxu0 0.0
    %266 = vmatpush1.msra.mxu0 %v114
    %267 = vmatprep.subr.mxu0 0.0
    %268 = vmatpush1.msra.mxu0 %v115
    %269 = vmatprep.subr.mxu0 0.0
    %270 = vmatpush1.msra.mxu0 %v116
    %271 = vmatprep.subr.mxu0 0.0
    %272 = vmatpush1.msra.mxu0 %v117
    %273 = vmatprep.subr.mxu0 0.0
    %274 = vmatpush1.msra.mxu0 %v118
    %275 = vmatprep.subr.mxu0 0.0
    %276 = vmatpush1.msra.mxu0 %v119
    %277 = vmatprep.subr.mxu0 0.0
    %278 = vmatpush1.msra.mxu0 %v120
    %279 = vmatprep.subr.mxu0 0.0
    %280 = vmatpush1.msra.mxu0 %v121
    %281 = vmatprep.subr.mxu0 0.0
    %282 = vmatpush1.msra.mxu0 %v122
    %283 = vmatprep.mubr.f32.mxu0 %v84
    %284 = vmatmul.mubr.f32.gmra.mrb[0].mxu0 %v83
    %v285 = vpop.f32.mrb[0].mxu0
    %v286 = vadd.f32 0.0, %v285
    %v287 = vpop.f32.mrb[0].mxu0
    %288 = vdwg.mxu0
    %289 = vmatprep.subr.mxu0 0.0
    %290 = vmatpush1.msra.mxu0 %v123
    %291 = vmatprep.subr.mxu0 0.0
    %292 = vmatpush1.msra.mxu0 %v124
    %293 = vmatprep.subr.mxu0 0.0
    %294 = vmatpush1.msra.mxu0 %v125
    %295 = vmatprep.subr.mxu0 0.0
    %296 = vmatpush1.msra.mxu0 %v126
    %297 = vmatprep.subr.mxu0 0.0
    %298 = vmatpush1.msra.mxu0 %v127
    %299 = vmatprep.subr.mxu0 0.0
    %300 = vmatpush1.msra.mxu0 %v128
    %301 = vmatprep.subr.mxu0 0.0
    %302 = vmatpush1.msra.mxu0 %v129
    %303 = vmatprep.subr.mxu0 0.0
    %304 = vmatpush1.msra.mxu0 %v130
    %305 = vmatprep.subr.mxu0 0.0
    %306 = vmatpush1.msra.mxu0 %v131
    %307 = vmatprep.subr.mxu0 0.0
    %308 = vmatpush1.msra.mxu0 %v132
    %309 = vmatprep.subr.mxu0 0.0
    %310 = vmatpush1.msra.mxu0 %v133
    %311 = vmatprep.subr.mxu0 0.0
    %312 = vmatpush1.msra.mxu0 %v134
    %313 = vmatprep.subr.mxu0 0.0
    %314 = vmatpush1.msra.mxu0 %v135
    %315 = vmatprep.subr.mxu0 0.0
    %316 = vmatpush1.msra.mxu0 %v136
    %317 = vmatprep.subr.mxu0 0.0
    %318 = vmatpush1.msra.mxu0 %v137
    %319 = vmatprep.subr.mxu0 0.0
    %320 = vmatpush1.msra.mxu0 %v138
    %321 = vmatprep.subr.mxu0 0.0
    %322 = vmatpush1.msra.mxu0 %v139
    %323 = vmatprep.subr.mxu0 0.0
    %324 = vmatpush1.msra.mxu0 %v140
    %325 = vmatprep.subr.mxu0 0.0
    %326 = vmatpush1.msra.mxu0 %v141
    %327 = vmatprep.subr.mxu0 0.0
    %328 = vmatpush1.msra.mxu0 %v142
    %329 = vmatprep.subr.mxu0 0.0
    %330 = vmatpush1.msra.mxu0 %v143
    %331 = vmatprep.subr.mxu0 0.0
    %332 = vmatpush1.msra.mxu0 %v144
    %333 = vmatprep.subr.mxu0 0.0
    %334 = vmatpush1.msra.mxu0 %v145
    %335 = vmatprep.subr.mxu0 0.0
    %336 = vmatpush1.msra.mxu0 %v146
    %337 = vmatprep.subr.mxu0 0.0
    %338 = vmatpush1.msra.mxu0 %v147
    %339 = vmatprep.subr.mxu0 0.0
    %340 = vmatpush1.msra.mxu0 %v148
    %341 = vmatprep.subr.mxu0 0.0
    %342 = vmatpush1.msra.mxu0 %v149
    %343 = vmatprep.subr.mxu0 0.0
    %344 = vmatpush1.msra.mxu0 %v150
    %345 = vmatprep.subr.mxu0 0.0
    %346 = vmatpush1.msra.mxu0 %v151
    %347 = vmatprep.subr.mxu0 0.0
    %348 = vmatpush1.msra.mxu0 %v152
    %349 = vmatprep.subr.mxu0 0.0
    %350 = vmatpush1.msra.mxu0 %v153
    %351 = vmatprep.subr.mxu0 0.0
    %352 = vmatpush1.msra.mxu0 %v154
    %353 = vmatprep.mubr.f32.mxu0 %v86
    %354 = vmatmul.mubr.f32.gmra.mrb[0].mxu0 %v85
    %v355 = vpop.f32.mrb[0].mxu0
    %v356 = vadd.f32 0.0, %v355
    %v357 = vpop.f32.mrb[0].mxu0
    %358 = vdwg.mxu0
    %359 = vmatprep.subr.mxu0 0.0
    %360 = vmatpush1.msra.mxu0 %v155
    %361 = vmatprep.subr.mxu0 0.0
    %362 = vmatpush1.msra.mxu0 %v156
    %363 = vmatprep.subr.mxu0 0.0
    %364 = vmatpush1.msra.mxu0 %v157
    %365 = vmatprep.subr.mxu0 0.0
    %366 = vmatpush1.msra.mxu0 %v158
    %367 = vmatprep.subr.mxu0 0.0
    %368 = vmatpush1.msra.mxu0 %v159
    %369 = vmatprep.subr.mxu0 0.0
    %370 = vmatpush1.msra.mxu0 %v160
    %371 = vmatprep.subr.mxu0 0.0
    %372 = vmatpush1.msra.mxu0 %v161
    %373 = vmatprep.subr.mxu0 0.0
    %374 = vmatpush1.msra.mxu0 %v162
    %375 = vmatprep.subr.mxu0 0.0
    %376 = vmatpush1.msra.mxu0 %v163
    %377 = vmatprep.subr.mxu0 0.0
    %378 = vmatpush1.msra.mxu0 %v164
    %379 = vmatprep.subr.mxu0 0.0
    %380 = vmatpush1.msra.mxu0 %v165
    %381 = vmatprep.subr.mxu0 0.0
    %382 = vmatpush1.msra.mxu0 %v166
    %383 = vmatprep.subr.mxu0 0.0
    %384 = vmatpush1.msra.mxu0 %v167
    %385 = vmatprep.subr.mxu0 0.0
    %386 = vmatpush1.msra.mxu0 %v168
    %387 = vmatprep.subr.mxu0 0.0
    %388 = vmatpush1.msra.mxu0 %v169
    %389 = vmatprep.subr.mxu0 0.0
    %390 = vmatpush1.msra.mxu0 %v170
    %391 = vmatprep.subr.mxu0 0.0
    %392 = vmatpush1.msra.mxu0 %v171
    %393 = vmatprep.subr.mxu0 0.0
    %394 = vmatpush1.msra.mxu0 %v172
    %395 = vmatprep.subr.mxu0 0.0
    %396 = vmatpush1.msra.mxu0 %v173
    %397 = vmatprep.subr.mxu0 0.0
    %398 = vmatpush1.msra.mxu0 %v174
    %399 = vmatprep.subr.mxu0 0.0
    %400 = vmatpush1.msra.mxu0 %v175
    %401 = vmatprep.subr.mxu0 0.0
    %402 = vmatpush1.msra.mxu0 %v176
    %403 = vmatprep.subr.mxu0 0.0
    %404 = vmatpush1.msra.mxu0 %v177
    %405 = vmatprep.subr.mxu0 0.0
    %406 = vmatpush1.msra.mxu0 %v178
    %407 = vmatprep.subr.mxu0 0.0
    %408 = vmatpush1.msra.mxu0 %v179
    %409 = vmatprep.subr.mxu0 0.0
    %410 = vmatpush1.msra.mxu0 %v180
    %411 = vmatprep.subr.mxu0 0.0
    %412 = vmatpush1.msra.mxu0 %v181
    %413 = vmatprep.subr.mxu0 0.0
    %414 = vmatpush1.msra.mxu0 %v182
    %415 = vmatprep.subr.mxu0 0.0
    %416 = vmatpush1.msra.mxu0 %v183
    %417 = vmatprep.subr.mxu0 0.0
    %418 = vmatpush1.msra.mxu0 %v184
    %419 = vmatprep.subr.mxu0 0.0
    %420 = vmatpush1.msra.mxu0 %v185
    %421 = vmatprep.subr.mxu0 0.0
    %422 = vmatpush1.msra.mxu0 %v186
    %423 = vmatprep.mubr.f32.mxu0 %v88
    %424 = vmatmul.mubr.f32.gmra.mrb[0].mxu0 %v87
    %v425 = vpop.f32.mrb[0].mxu0
    %v426 = vadd.f32 0.0, %v425
    %v427 = vpop.f32.mrb[0].mxu0
    %428 = vdwg.mxu0
    %429 = vmatprep.subr.mxu0 0.0
    %430 = vmatpush1.msra.mxu0 %v187
    %431 = vmatprep.subr.mxu0 0.0
    %432 = vmatpush1.msra.mxu0 %v188
    %433 = vmatprep.subr.mxu0 0.0
    %434 = vmatpush1.msra.mxu0 %v189
    %435 = vmatprep.subr.mxu0 0.0
    %436 = vmatpush1.msra.mxu0 %v190
    %437 = vmatprep.subr.mxu0 0.0
    %438 = vmatpush1.msra.mxu0 %v191
    %439 = vmatprep.subr.mxu0 0.0
    %440 = vmatpush1.msra.mxu0 %v192
    %441 = vmatprep.subr.mxu0 0.0
    %442 = vmatpush1.msra.mxu0 %v193
    %443 = vmatprep.subr.mxu0 0.0
    %444 = vmatpush1.msra.mxu0 %v194
    %445 = vmatprep.subr.mxu0 0.0
    %446 = vmatpush1.msra.mxu0 %v195
    %447 = vmatprep.subr.mxu0 0.0
    %448 = vmatpush1.msra.mxu0 %v196
    %449 = vmatprep.subr.mxu0 0.0
    %450 = vmatpush1.msra.mxu0 %v197
    %451 = vmatprep.subr.mxu0 0.0
    %452 = vmatpush1.msra.mxu0 %v198
    %453 = vmatprep.subr.mxu0 0.0
    %454 = vmatpush1.msra.mxu0 %v199
    %455 = vmatprep.subr.mxu0 0.0
    %456 = vmatpush1.msra.mxu0 %v200
    %457 = vmatprep.subr.mxu0 0.0
    %458 = vmatpush1.msra.mxu0 %v201
    %459 = vmatprep.subr.mxu0 0.0
    %460 = vmatpush1.msra.mxu0 %v202
    %461 = vmatprep.subr.mxu0 0.0
    %462 = vmatpush1.msra.mxu0 %v203
    %463 = vmatprep.subr.mxu0 0.0
    %464 = vmatpush1.msra.mxu0 %v204
    %465 = vmatprep.subr.mxu0 0.0
    %466 = vmatpush1.msra.mxu0 %v205
    %467 = vmatprep.subr.mxu0 0.0
    %468 = vmatpush1.msra.mxu0 %v206
    %469 = vmatprep.subr.mxu0 0.0
    %470 = vmatpush1.msra.mxu0 %v207
    %471 = vmatprep.subr.mxu0 0.0
    %472 = vmatpush1.msra.mxu0 %v208
    %473 = vmatprep.subr.mxu0 0.0
    %474 = vmatpush1.msra.mxu0 %v209
    %475 = vmatprep.subr.mxu0 0.0
    %476 = vmatpush1.msra.mxu0 %v210
    %477 = vmatprep.subr.mxu0 0.0
    %478 = vmatpush1.msra.mxu0 %v211
    %479 = vmatprep.subr.mxu0 0.0
    %480 = vmatpush1.msra.mxu0 %v212
    %481 = vmatprep.subr.mxu0 0.0
    %482 = vmatpush1.msra.mxu0 %v213
    %483 = vmatprep.subr.mxu0 0.0
    %484 = vmatpush1.msra.mxu0 %v214
    %485 = vmatprep.subr.mxu0 0.0
    %486 = vmatpush1.msra.mxu0 %v215
    %487 = vmatprep.subr.mxu0 0.0
    %488 = vmatpush1.msra.mxu0 %v216
    %489 = vmatprep.subr.mxu0 0.0
    %490 = vmatpush1.msra.mxu0 %v217
    %491 = vmatprep.subr.mxu0 0.0
    %492 = vmatpush1.msra.mxu0 %v218
    %493 = vmatprep.mubr.f32.mxu0 %v90
    %494 = vmatmul.mubr.f32.gmra.mrb[0].mxu0 %v89
    %v495 = vpop.f32.mrb[0].mxu0
    %v496 = vadd.f32 0.0, %v495
    %v497 = vpop.f32.mrb[0].mxu0
    %498 = vdwg.mxu0
    %v499 = vadd.f32 %v79, %v286
    %v500 = vadd.f32 %v80, %v356
    %v501 = vadd.f32 %v81, %v426
    %v502 = vadd.f32 %v82, %v496
    %503 = vst [vmem:[#allocation7] sm:$0xff] %v499
    %504 = vst [vmem:[#allocation7 + $0x8] sm:$0xff] %v500
    %505 = vst [vmem:[#allocation7 + $0x10] sm:$0xff] %v501
    %506 = vst [vmem:[#allocation7 + $0x18] sm:$0xff] %v502
    // Predicated region
    $region26: #{tpu_custom_call.1} parent=1 // pred_check
      _
    $region27: #{tpu_custom_call.1} parent=1 // pred_check_branch
      %508 = sbr.rel (0) target = $region29
    $region28: #{tpu_custom_call.1} parent=1 // pred_region
      %s510 = ssub.s32 512, 512
      %511 = vsyncadd [#allocation4], %s510
      %s512 = sshll.u32 [#allocation7], 4
      %s513 = int_to_ptr.vmem [resolvable:$true] %s512
      %518 = dma.vmem_to_hbm [thread:$0]  %s513, 512, %s3, [#allocation4], 128, 128, 8
    $region29: #{tpu_custom_call.1} parent=1 // pred_fallthru
      _
    // Predicated region
    $region30: #{tpu_custom_call.1} parent=1 // pred_check
      _
    $region31: #{tpu_custom_call.1} parent=1 // pred_check_branch
      %520 = sbr.rel (0) target = $region33
    $region32: #{tpu_custom_call.1} parent=1 // pred_region
      %521 = dma.done [#allocation4], 512
    $region33: #{tpu_custom_call.1} parent=1 // pred_fallthru
      _
    %522 = vsyncpa [#allocation3], 1
    %523 = vsyncpa [#allocation6], 1
    %524 = vsyncpa [#allocation4], 1

</llo_original>
